<compile_context>
chip_gen: v5e
topology: v5e:2x2
jax: 0.10.0
libtpu: 0.0.40
codegen_flags: <defaults>
</compile_context>

<pallas_src>
import functools

import jax
import jax.numpy as jnp
from jax.experimental import pallas as pl
from jax.experimental.pallas import tpu as pltpu


_PARAM_COLS = 11  # [sp_h1,b1,ta1, sp_h2,b2,ta2, sp_h3,b3,ta3, sp_h4,b4]


def _bitestimator_kernel(x_ref, p_ref, o_ref, *, compute_dtype):
    """Fused 4-stage Bitparm chain on one (row_tile, col_tile) block.

    p_ref holds per-row *derived* params: softplus(h*), b*, tanh(a*).
    """
    x = x_ref[...]                      # (rt, ct) f32
    p = p_ref[...]                      # (rt, 11) f32

    def col(k):                         # (rt, 1) column, broadcasts over lanes
        return p[:, k:k + 1]

    def tanh_c(v):
        # Transcendental in compute_dtype (bf16 on v6e/v7x ~doubles EUP rate);
        # the casts land in the under-utilized VALU slots.
        if compute_dtype == jnp.float32:
            return jnp.tanh(v)
        return jnp.tanh(v.astype(compute_dtype)).astype(jnp.float32)

    y = x
    for s in range(3):                  # non-final Bitparm stages
        y = y * col(3 * s) + col(3 * s + 1)          # y*softplus(h)+b
        y = y + tanh_c(y) * col(3 * s + 2)           # y + tanh(y)*tanh(a)
    y = y * col(9) + col(10)            # final Bitparm affine
    # sigmoid(y) == 0.5*(tanh(0.5*y)+1): one EUP op instead of exp + divide.
    o_ref[...] = (0.5 * (tanh_c(0.5 * y) + 1.0)).astype(o_ref.dtype)


def _choose_tile(n, target, quantum):
    """Largest divisor of n that is <= target and a multiple of quantum.

    Falls back to the full extent n (always a legal block size)."""
    if n <= target:
        return n
    t = (target // quantum) * quantum
    while t >= quantum:
        if n % t == 0:
            return t
        t -= quantum
    return n


def bit_estimator_forward(x, params, *, use_bf16_transcendentals=False,
                          target_row_tile=256, target_col_tile=2048):
    """x: (B, C, H, W) float32.  params: dict of 11 arrays, each shape (C,)."""
    B, C, H, W = x.shape
    rows, cols = B * C, H * W
    x2d = x.reshape(rows, cols)

    # Precompute derived per-channel params on (C,) vectors (negligible cost)
    # and pack them into a single (rows, 11) slab.  Row r = b*C + c, matching
    # x.reshape(B*C, H*W), so each (C,) vector is tiled across the batch.
    def sp(v):
        return jnp.logaddexp(v, 0.0)    # stable softplus(beta=1)

    derived = [
        sp(params["h1"]), params["b1"], jnp.tanh(params["a1"]),
        sp(params["h2"]), params["b2"], jnp.tanh(params["a2"]),
        sp(params["h3"]), params["b3"], jnp.tanh(params["a3"]),
        sp(params["h4"]), params["b4"],
    ]
    pslab = jnp.stack([jnp.tile(d.astype(jnp.float32), B) for d in derived],
                      axis=-1)          # (rows, 11)

    row_tile = _choose_tile(rows, target_row_tile, 8)
    col_tile = _choose_tile(cols, target_col_tile, 128)
    grid = (rows // row_tile, cols // col_tile)

    x_spec = pl.BlockSpec((row_tile, col_tile), lambda i, j: (i, j))
    p_spec = pl.BlockSpec((row_tile, _PARAM_COLS), lambda i, j: (i, 0))

    kernel = functools.partial(
        _bitestimator_kernel,
        compute_dtype=jnp.bfloat16 if use_bf16_transcendentals
        else jnp.float32)

    out2d = pl.pallas_call(
        kernel,
        out_shape=jax.ShapeDtypeStruct((rows, cols), x.dtype),
        grid_spec=pltpu.PrefetchScalarGridSpec(
            num_scalar_prefetch=0,
            grid=grid,
            in_specs=[x_spec, p_spec],
            out_specs=x_spec,
        ),
        compiler_params=pltpu.CompilerParams(
            dimension_semantics=("parallel", "parallel"),
            vmem_limit_bytes=32 * 1024 * 1024),
    )(x2d, pslab)

    return out2d.reshape(B, C, H, W)


def init_params(key, channel):
    """Deterministic init matching torch.nn.init.normal_(..., 0, 0.01)."""
    names = ("h1", "b1", "a1", "h2", "b2", "a2", "h3", "b3", "a3", "h4", "b4")
    keys = jax.random.split(key, len(names))
    return {n: 0.01 * jax.random.normal(k, (channel,), dtype=jnp.float32)
            for n, k in zip(names, keys)}


def bit_estimator_ref(x, params):
    """Pure-JAX reference of the PyTorch forward (for sanity check)."""
    def sp(v):
        return jnp.logaddexp(v, 0.0)

    def bc(p):  # (C,) -> (1, C, 1, 1)
        return p.reshape(1, -1, 1, 1)

    def stage(y, h, b, a):
        y = y * sp(bc(h)) + bc(b)
        return y + jnp.tanh(y) * jnp.tanh(bc(a))

    y = stage(x, params["h1"], params["b1"], params["a1"])
    y = stage(y, params["h2"], params["b2"], params["a2"])
    y = stage(y, params["h3"], params["b3"], params["a3"])
    y = y * sp(bc(params["h4"])) + bc(params["b4"])
    return jax.nn.sigmoid(y)


if __name__ == "__main__":
    key = jax.random.PRNGKey(0)
    k_x, k_p = jax.random.split(key)

    B, C, H, W = 2, 4, 16, 16
    x = jax.random.normal(k_x, (B, C, H, W), dtype=jnp.float32)
    params = init_params(k_p, C)

    ref = bit_estimator_ref(x, params)

    # f32 path (default, bit-accurate vs reference up to sigmoid reformulation)
    out = jax.block_until_ready(bit_estimator_forward(x, params))
    assert out.shape == (B, C, H, W)
    assert jnp.allclose(out, ref, atol=1e-5, rtol=1e-5)

    # bf16 transcendental path (v6e/v7x EUP optimization), looser tolerance.
    out_bf16 = jax.block_until_ready(
        bit_estimator_forward(x, params, use_bf16_transcendentals=True))
    assert jnp.allclose(out_bf16, ref, atol=3e-2, rtol=0.0)

    print("KERNEL_OK")
</pallas_src>

<mosaic_0001>
module attributes {stable_mosaic.version = 11 : i64} {
  func.func @_bitestimator_kernel(%arg0: i32, %arg1: i32, %arg2: memref<8x256xf32, #tpu.memory_space<vmem>>, %arg3: memref<8x11xf32, #tpu.memory_space<vmem>>, %arg4: memref<8x256xf32, #tpu.memory_space<vmem>>) attributes {dimension_semantics = [#tpu.dimension_semantics<parallel>, #tpu.dimension_semantics<parallel>], iteration_bounds = array<i64: 1, 1>, scalar_prefetch = 0 : i64, scratch_operands = 0 : i64, tpu.core_type = #tpu.core_type<tc>, window_params = [{transform_indices = @transform_0, window_bounds = array<i64: 8, 256>}, {transform_indices = @transform_1, window_bounds = array<i64: 8, 11>}, {transform_indices = @transform_2, window_bounds = array<i64: 8, 256>}]} {
    %c0 = arith.constant 0 : index
    %c0_0 = arith.constant 0 : index
    %0 = vector.load %arg2[%c0, %c0_0] : memref<8x256xf32, #tpu.memory_space<vmem>>, vector<8x256xf32>
    %c0_1 = arith.constant 0 : index
    %c0_2 = arith.constant 0 : index
    %1 = vector.load %arg3[%c0_1, %c0_2] : memref<8x11xf32, #tpu.memory_space<vmem>>, vector<8x11xf32>
    %2 = vector.extract_strided_slice %1 {offsets = [0, 0], sizes = [8, 1], strides = [1, 1]} : vector<8x11xf32> to vector<8x1xf32>
    %3 = vector.broadcast %2 : vector<8x1xf32> to vector<8x256xf32>
    %4 = arith.mulf %0, %3 : vector<8x256xf32>
    %5 = vector.extract_strided_slice %1 {offsets = [0, 1], sizes = [8, 1], strides = [1, 1]} : vector<8x11xf32> to vector<8x1xf32>
    %6 = vector.broadcast %5 : vector<8x1xf32> to vector<8x256xf32>
    %7 = arith.addf %4, %6 : vector<8x256xf32>
    %8 = math.tanh %7 : vector<8x256xf32>
    %9 = vector.extract_strided_slice %1 {offsets = [0, 2], sizes = [8, 1], strides = [1, 1]} : vector<8x11xf32> to vector<8x1xf32>
    %10 = vector.broadcast %9 : vector<8x1xf32> to vector<8x256xf32>
    %11 = arith.mulf %8, %10 : vector<8x256xf32>
    %12 = arith.addf %7, %11 : vector<8x256xf32>
    %13 = vector.extract_strided_slice %1 {offsets = [0, 3], sizes = [8, 1], strides = [1, 1]} : vector<8x11xf32> to vector<8x1xf32>
    %14 = vector.broadcast %13 : vector<8x1xf32> to vector<8x256xf32>
    %15 = arith.mulf %12, %14 : vector<8x256xf32>
    %16 = vector.extract_strided_slice %1 {offsets = [0, 4], sizes = [8, 1], strides = [1, 1]} : vector<8x11xf32> to vector<8x1xf32>
    %17 = vector.broadcast %16 : vector<8x1xf32> to vector<8x256xf32>
    %18 = arith.addf %15, %17 : vector<8x256xf32>
    %19 = math.tanh %18 : vector<8x256xf32>
    %20 = vector.extract_strided_slice %1 {offsets = [0, 5], sizes = [8, 1], strides = [1, 1]} : vector<8x11xf32> to vector<8x1xf32>
    %21 = vector.broadcast %20 : vector<8x1xf32> to vector<8x256xf32>
    %22 = arith.mulf %19, %21 : vector<8x256xf32>
    %23 = arith.addf %18, %22 : vector<8x256xf32>
    %24 = vector.extract_strided_slice %1 {offsets = [0, 6], sizes = [8, 1], strides = [1, 1]} : vector<8x11xf32> to vector<8x1xf32>
    %25 = vector.broadcast %24 : vector<8x1xf32> to vector<8x256xf32>
    %26 = arith.mulf %23, %25 : vector<8x256xf32>
    %27 = vector.extract_strided_slice %1 {offsets = [0, 7], sizes = [8, 1], strides = [1, 1]} : vector<8x11xf32> to vector<8x1xf32>
    %28 = vector.broadcast %27 : vector<8x1xf32> to vector<8x256xf32>
    %29 = arith.addf %26, %28 : vector<8x256xf32>
    %30 = math.tanh %29 : vector<8x256xf32>
    %31 = vector.extract_strided_slice %1 {offsets = [0, 8], sizes = [8, 1], strides = [1, 1]} : vector<8x11xf32> to vector<8x1xf32>
    %32 = vector.broadcast %31 : vector<8x1xf32> to vector<8x256xf32>
    %33 = arith.mulf %30, %32 : vector<8x256xf32>
    %34 = arith.addf %29, %33 : vector<8x256xf32>
    %35 = vector.extract_strided_slice %1 {offsets = [0, 9], sizes = [8, 1], strides = [1, 1]} : vector<8x11xf32> to vector<8x1xf32>
    %36 = vector.broadcast %35 : vector<8x1xf32> to vector<8x256xf32>
    %37 = arith.mulf %34, %36 : vector<8x256xf32>
    %38 = vector.extract_strided_slice %1 {offsets = [0, 10], sizes = [8, 1], strides = [1, 1]} : vector<8x11xf32> to vector<8x1xf32>
    %39 = vector.broadcast %38 : vector<8x1xf32> to vector<8x256xf32>
    %40 = arith.addf %37, %39 : vector<8x256xf32>
    %cst = arith.constant 5.000000e-01 : f32
    %41 = vector.broadcast %cst : f32 to vector<8x256xf32>
    %42 = arith.mulf %41, %40 : vector<8x256xf32>
    %43 = math.tanh %42 : vector<8x256xf32>
    %cst_3 = arith.constant 1.000000e+00 : f32
    %44 = vector.broadcast %cst_3 : f32 to vector<8x256xf32>
    %45 = arith.addf %43, %44 : vector<8x256xf32>
    %cst_4 = arith.constant 5.000000e-01 : f32
    %46 = vector.broadcast %cst_4 : f32 to vector<8x256xf32>
    %47 = arith.mulf %46, %45 : vector<8x256xf32>
    %c0_5 = arith.constant 0 : index
    %c0_6 = arith.constant 0 : index
    %48 = vector.load %arg4[%c0_5, %c0_6] : memref<8x256xf32, #tpu.memory_space<vmem>>, vector<8x256xf32>
    tpu.vector_store %arg4[%c0_5, %c0_6], %47 {strides = array<i32>} : memref<8x256xf32, #tpu.memory_space<vmem>>, vector<8x256xf32>,
    return
  }
  func.func @transform_0(%arg0: i32, %arg1: i32) -> (i32, i32) {
    %c0_i32 = arith.constant 0 : i32
    return %arg0, %arg1 : i32, i32
  }
  func.func @transform_1(%arg0: i32, %arg1: i32) -> (i32, i32) {
    %c0_i32 = arith.constant 0 : i32
    %c0_i32_0 = arith.constant 0 : i32
    return %arg0, %c0_i32 : i32, i32
  }
  func.func @transform_2(%arg0: i32, %arg1: i32) -> (i32, i32) {
    %c0_i32 = arith.constant 0 : i32
    return %arg0, %arg1 : i32, i32
  }
}

</mosaic_0001>

<llo_original>
// kernel: tpu_custom_call.1
$region0: #{tpu_custom_call.1}
  #allocation0 [shape = 'u32[]', space=smem, size = 0x4, offset = 0x4, fixed_abs, tag = 'smem constant byte address 0x4 - core index']
  #allocation1 [shape = 'u32[72,128]{1,0:T(1,128)}', space=vmem, size = 0x9000, scoped, tag = 'internal scratch']
  %s0 = inlined_call_operand.hbm [shape: f32[8,256], index: 0, kind: input, shape index: {}]
  %s1 = inlined_call_operand.hbm [shape: f32[8,11], index: 1, kind: input, shape index: {}]
  %s2 = inlined_call_operand.hbm [shape: f32[8,256], index: 2, kind: output, shape index: {}]
  %s3 = sld [smem:[#allocation0]]
  $region26: #{tpu_custom_call.1} parent=0
    _
  %s5 = ssub.s32 1, %s3
  %s6 = scalar_select 0, %s5, %s3
  $region1: #{tpu_custom_call.1} parent=0
    #allocation2 [shape = 'u8[8192]{0}', space=vmem, size = 0x2000, scoped, tag = 'input window, operand 0, single buffered']
    #allocation3 [shape = 's32[1]{0}', space=sflag, size = 0x4, scoped, tag = 'scoped memory for tpu_custom_call.1']
    #allocation4 [shape = 's32[1]{0}', space=sflag, size = 0x4, scoped, tag = 'scoped memory for tpu_custom_call.1']
    #allocation5 [shape = 'u8[4096]{0}', space=vmem, size = 0x1000, scoped, tag = 'input window, operand 1, single buffered']
    #allocation6 [shape = 's32[1]{0}', space=sflag, size = 0x4, scoped, tag = 'scoped memory for tpu_custom_call.1']
    #allocation7 [shape = 'u8[8192]{0}', space=vmem, size = 0x2000, scoped, tag = 'output window, operand 0, single buffered']
    %7 = vsyncpa [#allocation3], 0
    %8 = vsyncpa [#allocation6], 0
    %9 = vsyncpa [#allocation4], 0
    // Predicated region
    $region2: #{tpu_custom_call.1} parent=1 // pred_check
      _
    $region3: #{tpu_custom_call.1} parent=1 // pred_check_branch
      %11 = sbr.rel (0) target = $region5
    $region4: #{tpu_custom_call.1} parent=1 // pred_region
      %13 = vsyncadd [#allocation3], 0
      %s15 = sshll.u32 %s0, 4
      %s16 = int_to_ptr.hbm [resolvable:$true] %s15
      %s17 = sshll.u32 [#allocation2], 4
      %s18 = int_to_ptr.vmem [resolvable:$true] %s17
      %20 = dma.hbm_to_vmem [thread:$0]  %s16, 256, %s18, [#allocation3]
    $region5: #{tpu_custom_call.1} parent=1 // pred_fallthru
      _
    // Predicated region
    $region6: #{tpu_custom_call.1} parent=1 // pred_check
      _
    $region7: #{tpu_custom_call.1} parent=1 // pred_check_branch
      %22 = sbr.rel (0) target = $region9
    $region8: #{tpu_custom_call.1} parent=1 // pred_region
      %24 = vsyncadd [#allocation6], 0
      %s26 = sshll.u32 %s1, 4
      %s27 = int_to_ptr.hbm [resolvable:$true] %s26
      %s28 = sshll.u32 [#allocation5], 4
      %s29 = int_to_ptr.vmem [resolvable:$true] %s28
      %31 = dma.hbm_to_vmem [thread:$0]  %s27, 128, %s29, [#allocation6]
    $region9: #{tpu_custom_call.1} parent=1 // pred_fallthru
      _
    // Predicated region
    $region10: #{tpu_custom_call.1} parent=1 // pred_check
      _
    $region11: #{tpu_custom_call.1} parent=1 // pred_check_branch
      %33 = sbr.rel (0) target = $region13
    $region12: #{tpu_custom_call.1} parent=1 // pred_region
      %35 = dma.done [#allocation3], 256
    $region13: #{tpu_custom_call.1} parent=1 // pred_fallthru
      _
    // Predicated region
    $region14: #{tpu_custom_call.1} parent=1 // pred_check
      _
    $region15: #{tpu_custom_call.1} parent=1 // pred_check_branch
      %37 = sbr.rel (0) target = $region17
    $region16: #{tpu_custom_call.1} parent=1 // pred_region
      %39 = dma.done [#allocation6], 128
    $region17: #{tpu_custom_call.1} parent=1 // pred_fallthru
      _
    %v40 = vld [vmem:[#allocation2] sm:$0xff]
    %v41 = vld [vmem:[#allocation2 + $0x8] sm:$0xff]
    %v42 = vld [vmem:[#allocation5] sm:$0xff]
    %44 = vset.pattern.permute.xlu0 0
    %45 = vperm.xlu0 %44, %v42
    %v46 = vpop.permute.xlu0 %45
    %v48 = vmul.f32 %v40, %v46
    %v49 = vmul.f32 %v41, %v46
    %50 = vset.pattern.permute.xlu0 1
    %51 = vperm.xlu0 %50, %v42
    %v52 = vpop.permute.xlu0 %51
    %v54 = vadd.f32 %v48, %v52
    %v55 = vadd.f32 %v49, %v52
    %v56 = vtanh.pop %v54
    %v57 = vtanh.pop %v55
    %58 = vset.pattern.permute.xlu0 2
    %59 = vperm.xlu0 %58, %v42
    %v60 = vpop.permute.xlu0 %59
    %v62 = vmul.f32 %v56, %v60
    %v63 = vmul.f32 %v57, %v60
    %v64 = vadd.f32 %v54, %v62
    %v65 = vadd.f32 %v55, %v63
    %66 = vset.pattern.permute.xlu0 3
    %67 = vperm.xlu0 %66, %v42
    %v68 = vpop.permute.xlu0 %67
    %v70 = vmul.f32 %v64, %v68
    %v71 = vmul.f32 %v65, %v68
    %72 = vset.pattern.permute.xlu0 4
    %73 = vperm.xlu0 %72, %v42
    %v74 = vpop.permute.xlu0 %73
    %v76 = vadd.f32 %v70, %v74
    %v77 = vadd.f32 %v71, %v74
    %v78 = vtanh.pop %v76
    %v79 = vtanh.pop %v77
    %80 = vset.pattern.permute.xlu0 5
    %81 = vperm.xlu0 %80, %v42
    %v82 = vpop.permute.xlu0 %81
    %v84 = vmul.f32 %v78, %v82
    %v85 = vmul.f32 %v79, %v82
    %v86 = vadd.f32 %v76, %v84
    %v87 = vadd.f32 %v77, %v85
    %88 = vset.pattern.permute.xlu0 6
    %89 = vperm.xlu0 %88, %v42
    %v90 = vpop.permute.xlu0 %89
    %v92 = vmul.f32 %v86, %v90
    %v93 = vmul.f32 %v87, %v90
    %94 = vset.pattern.permute.xlu0 7
    %95 = vperm.xlu0 %94, %v42
    %v96 = vpop.permute.xlu0 %95
    %v98 = vadd.f32 %v92, %v96
    %v99 = vadd.f32 %v93, %v96
    %v100 = vtanh.pop %v98
    %v101 = vtanh.pop %v99
    %102 = vset.pattern.permute.xlu0 8
    %103 = vperm.xlu0 %102, %v42
    %v104 = vpop.permute.xlu0 %103
    %v106 = vmul.f32 %v100, %v104
    %v107 = vmul.f32 %v101, %v104
    %v108 = vadd.f32 %v98, %v106
    %v109 = vadd.f32 %v99, %v107
    %110 = vset.pattern.permute.xlu0 9
    %111 = vperm.xlu0 %110, %v42
    %v112 = vpop.permute.xlu0 %111
    %v114 = vmul.f32 %v108, %v112
    %v115 = vmul.f32 %v109, %v112
    %116 = vset.pattern.permute.xlu0 10
    %117 = vperm.xlu0 %116, %v42
    %v118 = vpop.permute.xlu0 %117
    %v120 = vadd.f32 %v114, %v118
    %v121 = vadd.f32 %v115, %v118
    %v122 = vmul.f32 %v120, 0.5
    %v123 = vmul.f32 %v121, 0.5
    %v124 = vtanh.pop %v122
    %v125 = vtanh.pop %v123
    %v126 = vadd.f32 %v124, 1.0
    %v127 = vadd.f32 %v125, 1.0
    %v128 = vmul.f32 %v126, 0.5
    %v129 = vmul.f32 %v127, 0.5
    %130 = vst [vmem:[#allocation7] sm:$0xff] %v128
    %131 = vst [vmem:[#allocation7 + $0x8] sm:$0xff] %v129
    // Predicated region
    $region18: #{tpu_custom_call.1} parent=1 // pred_check
      _
    $region19: #{tpu_custom_call.1} parent=1 // pred_check_branch
      %133 = sbr.rel (0) target = $region21
    $region20: #{tpu_custom_call.1} parent=1 // pred_region
      %135 = vsyncadd [#allocation4], 0
      %s137 = sshll.u32 [#allocation7], 4
      %s138 = int_to_ptr.vmem [resolvable:$true] %s137
      %s139 = sshll.u32 %s2, 4
      %s140 = int_to_ptr.hbm [resolvable:$true] %s139
      %142 = dma.vmem_to_hbm [thread:$0]  %s138, 256, %s140, [#allocation4]
    $region21: #{tpu_custom_call.1} parent=1 // pred_fallthru
      _
    // Predicated region
    $region22: #{tpu_custom_call.1} parent=1 // pred_check
      _
    $region23: #{tpu_custom_call.1} parent=1 // pred_check_branch
      %144 = sbr.rel (0) target = $region25
    $region24: #{tpu_custom_call.1} parent=1 // pred_region
      %146 = dma.done [#allocation4], 256
    $region25: #{tpu_custom_call.1} parent=1 // pred_fallthru
      _
    %147 = vsyncpa [#allocation3], 1
    %148 = vsyncpa [#allocation6], 1
    %149 = vsyncpa [#allocation4], 1

</llo_original>
